<compile_context>
chip_gen: v7x
topology: tpu7x:2x2x1
jax: 0.10.0
libtpu: 0.0.40
codegen_flags: <defaults>
</compile_context>

<pallas_src>
import functools
import math

import jax
import jax.numpy as jnp
from jax import lax
from jax.experimental import pallas as pl
from jax.experimental.pallas import tpu as pltpu

LANES = 128
SUBLANES = 8
MAX_TILE_ROWS = 1024  # 1024x128 f32 block = 512 KiB; 2 inputs x 2 bufs = 2 MiB VMEM
_LN2 = math.log(2.0)


def _logcosh_kernel(yt_ref, yp_ref, out_ref, *, n_valid, tile_rows, apply_mask):
    # Upcast inside the kernel (free on the VPU; keeps HBM traffic minimal).
    e = yt_ref[...].astype(jnp.float32) - yp_ref[...].astype(jnp.float32)
    x = e + jnp.float32(1e-12)

    # Numerically stable log(cosh(x)) = |x| + log(1 + exp(-2|x|)) - log(2).
    # exp/log go to the EUP (own VLIW slot); the rest is a handful of VPU ops.
    a = jnp.abs(x)
    val = a + jnp.log(1.0 + jnp.exp(-2.0 * a)) - jnp.float32(_LN2)

    if apply_mask:
        # Zero out contributions from padded elements (only emitted when the
        # wrapper actually padded).
        row_ids = lax.broadcasted_iota(jnp.int32, (tile_rows, LANES), 0)
        lane_ids = lax.broadcasted_iota(jnp.int32, (tile_rows, LANES), 1)
        flat = (pl.program_id(0) * tile_rows + row_ids) * LANES + lane_ids
        val = jnp.where(flat < n_valid, val, jnp.float32(0.0))

    # Fold the tile to an (8, 128) lane-dense partial sum using only VPU adds
    # (no cross-sublane / cross-lane XLU reduce inside the hot loop).
    folded = val.reshape(tile_rows // SUBLANES, SUBLANES, LANES).sum(axis=0)
    out_ref[0, :, :] = folded


def logcosh_loss(y_t, y_prime_t):
    """Pallas implementation of LogCoshLoss.forward. Returns a scalar f32."""
    assert y_t.shape == y_prime_t.shape
    n = y_t.size

    # Keep original dtype in HBM; the kernel does the f32 upcast.
    yt = jnp.ravel(y_t)
    yp = jnp.ravel(y_prime_t)

    # Lay out as (rows, 128); rows rounded up to a multiple of 8 sublanes.
    rows = (n + LANES - 1) // LANES
    rows = ((rows + SUBLANES - 1) // SUBLANES) * SUBLANES
    tile_rows = min(MAX_TILE_ROWS, rows)
    rows = ((rows + tile_rows - 1) // tile_rows) * tile_rows
    padded = rows * LANES
    if padded != n:
        yt = jnp.pad(yt, (0, padded - n))
        yp = jnp.pad(yp, (0, padded - n))

    yt2 = yt.reshape(rows, LANES)
    yp2 = yp.reshape(rows, LANES)
    num_tiles = rows // tile_rows

    kernel = functools.partial(
        _logcosh_kernel,
        n_valid=n,
        tile_rows=tile_rows,
        apply_mask=(padded != n),
    )

    partials = pl.pallas_call(
        kernel,
        out_shape=jax.ShapeDtypeStruct((num_tiles, SUBLANES, LANES), jnp.float32),
        grid_spec=pltpu.PrefetchScalarGridSpec(
            num_scalar_prefetch=0,
            grid=(num_tiles,),
            in_specs=[
                pl.BlockSpec((tile_rows, LANES), lambda i: (i, 0)),
                pl.BlockSpec((tile_rows, LANES), lambda i: (i, 0)),
            ],
            out_specs=pl.BlockSpec((1, SUBLANES, LANES), lambda i: (i, 0, 0)),
        ),
        compiler_params=pltpu.CompilerParams(
            # Independent per-tile partial sums -> grid can be sharded across
            # both TensorCores on v7x.
            dimension_semantics=("parallel",),
        ),
    )(yt2, yp2)

    # Tiny epilogue reduction (num_tiles * 8 * 128 elements) + true-n mean.
    return jnp.sum(partials) / jnp.float32(n)


def logcosh_loss_ref(y_t, y_prime_t):
    e = y_t.astype(jnp.float32) - y_prime_t.astype(jnp.float32)
    return jnp.mean(jnp.log(jnp.cosh(e + 1e-12)))


if __name__ == "__main__":
    key = jax.random.PRNGKey(0)
    k1, k2 = jax.random.split(key)
    # NCHW, matching the PyTorch reference usage.
    y_t = jax.random.normal(k1, (2, 4, 16, 16), dtype=jnp.float32)
    y_prime_t = jax.random.normal(k2, (2, 4, 16, 16), dtype=jnp.float32)

    out = logcosh_loss(y_t, y_prime_t)
    out = jax.block_until_ready(out)

    ref = logcosh_loss_ref(y_t, y_prime_t)
    assert jnp.allclose(out, ref, rtol=1e-5, atol=1e-5), (out, ref)

    print("KERNEL_OK")
</pallas_src>

<mosaic_0001>
module attributes {stable_mosaic.version = 11 : i64} {
  func.func @_logcosh_kernel(%arg0: i32, %arg1: memref<16x128xf32, #tpu.memory_space<vmem>>, %arg2: memref<16x128xf32, #tpu.memory_space<vmem>>, %arg3: memref<1x8x128xf32, #tpu.memory_space<vmem>>) attributes {dimension_semantics = [#tpu.dimension_semantics<parallel>], iteration_bounds = array<i64: 1>, scalar_prefetch = 0 : i64, scratch_operands = 0 : i64, tpu.core_type = #tpu.core_type<tc>, window_params = [{transform_indices = @transform_0, window_bounds = array<i64: 16, 128>}, {transform_indices = @transform_1, window_bounds = array<i64: 16, 128>}, {transform_indices = @transform_2, window_bounds = array<i64: 1, 8, 128>}]} {
    %c0 = arith.constant 0 : index
    %c0_0 = arith.constant 0 : index
    %0 = vector.load %arg1[%c0, %c0_0] : memref<16x128xf32, #tpu.memory_space<vmem>>, vector<16x128xf32>
    %c0_1 = arith.constant 0 : index
    %c0_2 = arith.constant 0 : index
    %1 = vector.load %arg2[%c0_1, %c0_2] : memref<16x128xf32, #tpu.memory_space<vmem>>, vector<16x128xf32>
    %2 = arith.subf %0, %1 : vector<16x128xf32>
    %cst = arith.constant 9.99999996E-13 : f32
    %3 = vector.broadcast %cst : f32 to vector<16x128xf32>
    %4 = arith.addf %2, %3 : vector<16x128xf32>
    %5 = math.absf %4 : vector<16x128xf32>
    %cst_3 = arith.constant -2.000000e+00 : f32
    %6 = vector.broadcast %cst_3 : f32 to vector<16x128xf32>
    %7 = arith.mulf %6, %5 : vector<16x128xf32>
    %8 = math.exp %7 : vector<16x128xf32>
    %cst_4 = arith.constant 1.000000e+00 : f32
    %9 = vector.broadcast %cst_4 : f32 to vector<16x128xf32>
    %10 = arith.addf %9, %8 : vector<16x128xf32>
    %11 = math.log %10 : vector<16x128xf32>
    %12 = arith.addf %5, %11 : vector<16x128xf32>
    %cst_5 = arith.constant 0.693147182 : f32
    %13 = vector.broadcast %cst_5 : f32 to vector<16x128xf32>
    %14 = arith.subf %12, %13 : vector<16x128xf32>
    %15 = vector.shape_cast %14 : vector<16x128xf32> to vector<2x8x128xf32>
    %cst_6 = arith.constant dense<0.000000e+00> : vector<8x128xf32>
    %16 = vector.multi_reduction <add>, %15, %cst_6 [0] : vector<2x8x128xf32> to vector<8x128xf32>
    %c0_7 = arith.constant 0 : index
    %c0_8 = arith.constant 0 : index
    %c0_9 = arith.constant 0 : index
    %17 = vector.load %arg3[%c0_7, %c0_8, %c0_9] : memref<1x8x128xf32, #tpu.memory_space<vmem>>, vector<1x8x128xf32>
    %18 = vector.shape_cast %17 : vector<1x8x128xf32> to vector<8x128xf32>
    %19 = vector.shape_cast %16 : vector<8x128xf32> to vector<1x8x128xf32>
    tpu.vector_store %arg3[%c0_7, %c0_8, %c0_9], %19 {strides = array<i32>} : memref<1x8x128xf32, #tpu.memory_space<vmem>>, vector<1x8x128xf32>,
    return
  }
  func.func @transform_0(%arg0: i32) -> (i32, i32) {
    %c0_i32 = arith.constant 0 : i32
    %c0_i32_0 = arith.constant 0 : i32
    return %arg0, %c0_i32 : i32, i32
  }
  func.func @transform_1(%arg0: i32) -> (i32, i32) {
    %c0_i32 = arith.constant 0 : i32
    %c0_i32_0 = arith.constant 0 : i32
    return %arg0, %c0_i32 : i32, i32
  }
  func.func @transform_2(%arg0: i32) -> (i32, i32, i32) {
    %c0_i32 = arith.constant 0 : i32
    %c0_i32_0 = arith.constant 0 : i32
    %c0_i32_1 = arith.constant 0 : i32
    return %arg0, %c0_i32, %c0_i32_0 : i32, i32, i32
  }
}

</mosaic_0001>

<llo_original>
// kernel: tpu_custom_call.1
$region0: #{tpu_custom_call.1}
  #allocation0 [shape = 'u32[]', space=smem, size = 0x4, offset = 0x4, fixed_abs, tag = 'smem constant byte address 0x4 - core index']
  #allocation1 [shape = 'u32[144,128]{1,0:T(1,128)}', space=vmem, size = 0x12000, scoped, tag = 'internal scratch']
  %s0 = inlined_call_operand.hbm [shape: f32[16,128], index: 0, kind: input, shape index: {}]
  %s1 = inlined_call_operand.hbm [shape: f32[16,128], index: 1, kind: input, shape index: {}]
  %s2 = inlined_call_operand.hbm [shape: f32[1,8,128], index: 2, kind: output, shape index: {}]
  %s3 = sld [smem:[#allocation0]]
  $region26: #{tpu_custom_call.1} parent=0
    _
  %s5 = ssub.s32 1, %s3
  %s6 = scalar_select 0, %s5, %s3
  $region1: #{tpu_custom_call.1} parent=0
    #allocation2 [shape = 'u8[8192]{0}', space=vmem, size = 0x2000, scoped, tag = 'input window, operand 0, single buffered']
    #allocation3 [shape = 's32[1]{0}', space=sflag, size = 0x4, scoped, tag = 'scoped memory for tpu_custom_call.1']
    #allocation4 [shape = 's32[1]{0}', space=sflag, size = 0x4, scoped, tag = 'scoped memory for tpu_custom_call.1']
    #allocation5 [shape = 'u8[8192]{0}', space=vmem, size = 0x2000, scoped, tag = 'input window, operand 1, single buffered']
    #allocation6 [shape = 's32[1]{0}', space=sflag, size = 0x4, scoped, tag = 'scoped memory for tpu_custom_call.1']
    #allocation7 [shape = 'u8[4096]{0}', space=vmem, size = 0x1000, scoped, tag = 'output window, operand 0, single buffered']
    %7 = vsyncpa [#allocation3], 0
    %8 = vsyncpa [#allocation6], 0
    %9 = vsyncpa [#allocation4], 0
    // Predicated region
    $region2: #{tpu_custom_call.1} parent=1 // pred_check
      _
    $region3: #{tpu_custom_call.1} parent=1 // pred_check_branch
      %11 = sbr.rel (0) target = $region5
    $region4: #{tpu_custom_call.1} parent=1 // pred_region
      %s13 = ssub.s32 256, 256
      %14 = vsyncadd [#allocation3], %s13
      %s15 = sshll.u32 [#allocation2], 4
      %s16 = int_to_ptr.vmem [resolvable:$true] %s15
      %21 = dma.hbm_to_vmem [thread:$0]  %s0, 256, %s16, [#allocation3], 128, 128, 8
    $region5: #{tpu_custom_call.1} parent=1 // pred_fallthru
      _
    // Predicated region
    $region6: #{tpu_custom_call.1} parent=1 // pred_check
      _
    $region7: #{tpu_custom_call.1} parent=1 // pred_check_branch
      %23 = sbr.rel (0) target = $region9
    $region8: #{tpu_custom_call.1} parent=1 // pred_region
      %s25 = ssub.s32 256, 256
      %26 = vsyncadd [#allocation6], %s25
      %s27 = sshll.u32 [#allocation5], 4
      %s28 = int_to_ptr.vmem [resolvable:$true] %s27
      %33 = dma.hbm_to_vmem [thread:$0]  %s1, 256, %s28, [#allocation6], 128, 128, 8
    $region9: #{tpu_custom_call.1} parent=1 // pred_fallthru
      _
    // Predicated region
    $region10: #{tpu_custom_call.1} parent=1 // pred_check
      _
    $region11: #{tpu_custom_call.1} parent=1 // pred_check_branch
      %35 = sbr.rel (0) target = $region13
    $region12: #{tpu_custom_call.1} parent=1 // pred_region
      %36 = dma.done [#allocation3], 256
    $region13: #{tpu_custom_call.1} parent=1 // pred_fallthru
      _
    // Predicated region
    $region14: #{tpu_custom_call.1} parent=1 // pred_check
      _
    $region15: #{tpu_custom_call.1} parent=1 // pred_check_branch
      %38 = sbr.rel (0) target = $region17
    $region16: #{tpu_custom_call.1} parent=1 // pred_region
      %39 = dma.done [#allocation6], 256
    $region17: #{tpu_custom_call.1} parent=1 // pred_fallthru
      _
    %v40 = vld [vmem:[#allocation2] sm:$0xff]
    %v41 = vld [vmem:[#allocation2 + $0x8] sm:$0xff]
    %v42 = vld [vmem:[#allocation5] sm:$0xff]
    %v43 = vld [vmem:[#allocation5 + $0x8] sm:$0xff]
    %v44 = vsub.f32 %v40, %v42
    %v45 = vsub.f32 %v41, %v43
    %v46 = vadd.f32 %v44, 1e-12
    %v47 = vadd.f32 %v45, 1e-12
    %v48 = vand.u32 2147483647, %v46
    %v49 = vand.u32 2147483647, %v47
    %v50 = vmul.f32 %v48, -2.0
    %v51 = vmul.f32 %v49, -2.0
    %v52 = vmul.f32 %v50, 1.442695
    %v53 = vpow.pop %v52
    %v54 = vmul.f32 %v51, 1.442695
    %v55 = vpow.pop %v54
    %v56 = vadd.f32 %v53, 1.0
    %v57 = vadd.f32 %v55, 1.0
    %v58 = vlog2.pop %v56
    %v59 = vmul.f32 %v58, 0.6931472
    %v60 = vlog2.pop %v57
    %v61 = vmul.f32 %v60, 0.6931472
    %v62 = vadd.f32 %v48, %v59
    %v63 = vadd.f32 %v49, %v61
    %v64 = vsub.f32 %v62, 0.6931472
    %v65 = vsub.f32 %v63, 0.6931472
    %v66 = vadd.f32 %v64, %v65
    %67 = vst [vmem:[#allocation7] sm:$0xff] %v66
    // Predicated region
    $region18: #{tpu_custom_call.1} parent=1 // pred_check
      _
    $region19: #{tpu_custom_call.1} parent=1 // pred_check_branch
      %69 = sbr.rel (0) target = $region21
    $region20: #{tpu_custom_call.1} parent=1 // pred_region
      %s71 = ssub.s32 128, 128
      %72 = vsyncadd [#allocation4], %s71
      %s74 = sshll.u32 [#allocation7], 4
      %s75 = int_to_ptr.vmem [resolvable:$true] %s74
      %77 = dma.vmem_to_hbm [thread:$0]  %s75, 128, %s2, [#allocation4]
    $region21: #{tpu_custom_call.1} parent=1 // pred_fallthru
      _
    // Predicated region
    $region22: #{tpu_custom_call.1} parent=1 // pred_check
      _
    $region23: #{tpu_custom_call.1} parent=1 // pred_check_branch
      %79 = sbr.rel (0) target = $region25
    $region24: #{tpu_custom_call.1} parent=1 // pred_region
      %80 = dma.done [#allocation4], 128
    $region25: #{tpu_custom_call.1} parent=1 // pred_fallthru
      _
    %81 = vsyncpa [#allocation3], 1
    %82 = vsyncpa [#allocation6], 1
    %83 = vsyncpa [#allocation4], 1

</llo_original>
